<compile_context>
chip_gen: v5e
topology: v5e:2x2
jax: 0.10.0
libtpu: 0.0.40
codegen_flags: <defaults>
</compile_context>

<pallas_src>
import functools

import jax
import jax.numpy as jnp
from jax.experimental import pallas as pl
from jax.experimental.pallas import tpu as pltpu

MAX_ACTION = 2.0   # env.action_space.high[0] — synthetic constant
HIDDEN = 256
HEAD_LANES = 128   # lane-dense fused head width: [mean | std | zero pad]


def actor_kernel(x_ref, w1_ref, b1_ref, w2_ref, b2_ref, wh_ref, bh_ref,
                 out_ref, *, outp):
    # Layer 1: Linear(inp, 256) + ReLU  — bf16 MXU operands, f32 accumulate.
    h1 = jnp.dot(x_ref[...], w1_ref[...], preferred_element_type=jnp.float32)
    h1 = jnp.maximum(h1 + b1_ref[...], 0.0)

    # Layer 2: Linear(256, 256) + ReLU.
    h2 = jnp.dot(h1.astype(jnp.bfloat16), w2_ref[...],
                 preferred_element_type=jnp.float32)
    h2 = jnp.maximum(h2 + b2_ref[...], 0.0)

    # Fused heads: one (256, 128) matmul. Lanes [0, outp) -> mean head,
    # lanes [outp, 2*outp) -> std head, remaining lanes are zero padding.
    z = jnp.dot(h2.astype(jnp.bfloat16), wh_ref[...],
                preferred_element_type=jnp.float32) + bh_ref[...]

    lane = jax.lax.broadcasted_iota(jnp.int32, z.shape, 1)
    mean = MAX_ACTION * jnp.tanh(z)                    # f32 VPU/EUP math
    std = jnp.exp(jnp.clip(z, -20.0, 2.0))
    out_ref[...] = jnp.where(lane < outp, mean, std).astype(out_ref.dtype)


def actor_net_forward(x, params):
    (w1, b1, w2, b2, wo, bo, ws, bs) = params
    batch, inp = x.shape
    outp = wo.shape[1]
    assert 2 * outp <= HEAD_LANES, "fused head assumes 2*outp <= 128 lanes"

    # Fuse + zero-pad the two head weights/biases into one lane-dense slab.
    w_head = jnp.zeros((HIDDEN, HEAD_LANES), jnp.float32)
    w_head = w_head.at[:, :outp].set(wo).at[:, outp:2 * outp].set(ws)
    b_head = jnp.zeros((1, HEAD_LANES), jnp.float32)
    b_head = b_head.at[:, :outp].set(bo[0]).at[:, outp:2 * outp].set(bs[0])

    # bf16 MXU operands (accumulation stays f32 inside the kernel).
    x_bf = x.astype(jnp.bfloat16)
    w1_bf = w1.astype(jnp.bfloat16)
    w2_bf = w2.astype(jnp.bfloat16)
    wh_bf = w_head.astype(jnp.bfloat16)

    # Batch tile: multiple of 8 sublanes, capped so VMEM stays comfortable on
    # v7x (64 MiB physical / 32 MiB default scoped) even with double-buffering.
    tm = min(512, max(8, ((batch + 7) // 8) * 8))
    padded = ((batch + tm - 1) // tm) * tm
    if padded != batch:
        x_bf = jnp.pad(x_bf, ((0, padded - batch), (0, 0)))

    const = lambda i: (0, 0)   # weights/biases resident across grid steps

    out = pl.pallas_call(
        functools.partial(actor_kernel, outp=outp),
        out_shape=jax.ShapeDtypeStruct((padded, HEAD_LANES), jnp.float32),
        grid=(padded // tm,),
        in_specs=[
            pl.BlockSpec((tm, inp), lambda i: (i, 0)),        # x tile streams
            pl.BlockSpec((inp, HIDDEN), const),               # W1
            pl.BlockSpec((1, HIDDEN), const),                 # b1 (f32)
            pl.BlockSpec((HIDDEN, HIDDEN), const),            # W2
            pl.BlockSpec((1, HIDDEN), const),                 # b2 (f32)
            pl.BlockSpec((HIDDEN, HEAD_LANES), const),        # fused head W
            pl.BlockSpec((1, HEAD_LANES), const),             # fused head b
        ],
        out_specs=pl.BlockSpec((tm, HEAD_LANES), lambda i: (i, 0)),
        compiler_params=pltpu.CompilerParams(
            dimension_semantics=("parallel",)),
    )(x_bf, w1_bf, b1, w2_bf, b2, wh_bf, b_head)

    mean = out[:batch, :outp]
    std = out[:batch, outp:2 * outp]
    return mean, std


def init_params(key, inp, outp):
    """Deterministic synthetic init mirroring the PyTorch module:
    weights ~ N(0, 0.01); biases use nn.Linear's default U(-1/sqrt(fan_in), .)."""
    keys = jax.random.split(key, 8)

    def w(k, fan_in, fan_out):
        # stored as (in, out) = transpose of PyTorch's (out, in)
        return 0.01 * jax.random.normal(k, (fan_in, fan_out), dtype=jnp.float32)

    def b(k, fan_in, fan_out):
        bound = 1.0 / jnp.sqrt(fan_in)
        return jax.random.uniform(k, (1, fan_out), dtype=jnp.float32,
                                  minval=-bound, maxval=bound)

    w1 = w(keys[0], inp, HIDDEN);    b1 = b(keys[1], inp, HIDDEN)
    w2 = w(keys[2], HIDDEN, HIDDEN); b2 = b(keys[3], HIDDEN, HIDDEN)
    wo = w(keys[4], HIDDEN, outp);   bo = b(keys[5], HIDDEN, outp)
    ws = w(keys[6], HIDDEN, outp);   bs = b(keys[7], HIDDEN, outp)
    return (w1, b1, w2, b2, wo, bo, ws, bs)


def actor_net_reference(x, params):
    """Pure-JAX f32 reference for correctness checking."""
    (w1, b1, w2, b2, wo, bo, ws, bs) = params
    h1 = jnp.maximum(x @ w1 + b1, 0.0)
    h2 = jnp.maximum(h1 @ w2 + b2, 0.0)
    mean = MAX_ACTION * jnp.tanh(h2 @ wo + bo)
    std = jnp.exp(jnp.clip(h2 @ ws + bs, -20.0, 2.0))
    return mean, std


if __name__ == "__main__":
    key = jax.random.PRNGKey(0)
    k_params, k_x = jax.random.split(key)

    batch, inp, outp = 8, 8, 4  # (batch, state_dim) -> (batch, action_dim)
    params = init_params(k_params, inp, outp)
    x = jax.random.normal(k_x, (batch, inp), dtype=jnp.float32)

    mean, std = actor_net_forward(x, params)
    jax.block_until_ready((mean, std))

    mean_ref, std_ref = actor_net_reference(x, params)
    # bf16 MXU operands -> relaxed tolerance vs. the f32 reference.
    assert jnp.allclose(mean, mean_ref, atol=2e-2, rtol=2e-2)
    assert jnp.allclose(std, std_ref, atol=2e-2, rtol=2e-2)

    print("KERNEL_OK")
</pallas_src>

<mosaic_0001>
module attributes {stable_mosaic.version = 11 : i64} {
  func.func @actor_kernel(%arg0: i32, %arg1: memref<8x8xbf16, #tpu.memory_space<vmem>>, %arg2: memref<8x256xbf16, #tpu.memory_space<vmem>>, %arg3: memref<1x256xf32, #tpu.memory_space<vmem>>, %arg4: memref<256x256xbf16, #tpu.memory_space<vmem>>, %arg5: memref<1x256xf32, #tpu.memory_space<vmem>>, %arg6: memref<256x128xbf16, #tpu.memory_space<vmem>>, %arg7: memref<1x128xf32, #tpu.memory_space<vmem>>, %arg8: memref<8x128xf32, #tpu.memory_space<vmem>>) attributes {dimension_semantics = [#tpu.dimension_semantics<parallel>], iteration_bounds = array<i64: 1>, scalar_prefetch = 0 : i64, scratch_operands = 0 : i64, tpu.core_type = #tpu.core_type<tc>, window_params = [{transform_indices = @transform_0, window_bounds = array<i64: 8, 8>}, {pipeline_mode = #tpu.pipeline_mode<synchronous>, transform_indices = @transform_1, window_bounds = array<i64: 8, 256>}, {pipeline_mode = #tpu.pipeline_mode<synchronous>, transform_indices = @transform_2, window_bounds = array<i64: 1, 256>}, {pipeline_mode = #tpu.pipeline_mode<synchronous>, transform_indices = @transform_3, window_bounds = array<i64: 256, 256>}, {pipeline_mode = #tpu.pipeline_mode<synchronous>, transform_indices = @transform_4, window_bounds = array<i64: 1, 256>}, {pipeline_mode = #tpu.pipeline_mode<synchronous>, transform_indices = @transform_5, window_bounds = array<i64: 256, 128>}, {pipeline_mode = #tpu.pipeline_mode<synchronous>, transform_indices = @transform_6, window_bounds = array<i64: 1, 128>}, {transform_indices = @transform_7, window_bounds = array<i64: 8, 128>}]} {
    %c0 = arith.constant 0 : index
    %c0_0 = arith.constant 0 : index
    %0 = vector.load %arg1[%c0, %c0_0] : memref<8x8xbf16, #tpu.memory_space<vmem>>, vector<8x8xbf16>
    %c0_1 = arith.constant 0 : index
    %c0_2 = arith.constant 0 : index
    %1 = vector.load %arg2[%c0_1, %c0_2] : memref<8x256xbf16, #tpu.memory_space<vmem>>, vector<8x256xbf16>
    %cst = arith.constant dense<0.000000e+00> : vector<8x256xf32>
    %2 = tpu.matmul %0, %1, %cst {dimension_numbers = #tpu.dot_dimension_numbers<[1], [0], [0], [1], [0, 0, 1, 1], [], []>} : vector<8x8xbf16>, vector<8x256xbf16>, vector<8x256xf32> -> vector<8x256xf32>
    %c0_3 = arith.constant 0 : index
    %c0_4 = arith.constant 0 : index
    %3 = vector.load %arg3[%c0_3, %c0_4] : memref<1x256xf32, #tpu.memory_space<vmem>>, vector<1x256xf32>
    %4 = vector.broadcast %3 : vector<1x256xf32> to vector<8x256xf32>
    %5 = arith.addf %2, %4 : vector<8x256xf32>
    %cst_5 = arith.constant 0.000000e+00 : f32
    %6 = vector.broadcast %cst_5 : f32 to vector<8x256xf32>
    %7 = arith.maximumf %5, %6 : vector<8x256xf32>
    %8 = arith.truncf %7 : vector<8x256xf32> to vector<8x256xbf16>
    %c0_6 = arith.constant 0 : index
    %c0_7 = arith.constant 0 : index
    %9 = vector.load %arg4[%c0_6, %c0_7] : memref<256x256xbf16, #tpu.memory_space<vmem>>, vector<256x256xbf16>
    %cst_8 = arith.constant dense<0.000000e+00> : vector<8x256xf32>
    %10 = tpu.matmul %8, %9, %cst_8 {dimension_numbers = #tpu.dot_dimension_numbers<[1], [0], [0], [1], [0, 0, 1, 1], [], []>} : vector<8x256xbf16>, vector<256x256xbf16>, vector<8x256xf32> -> vector<8x256xf32>
    %c0_9 = arith.constant 0 : index
    %c0_10 = arith.constant 0 : index
    %11 = vector.load %arg5[%c0_9, %c0_10] : memref<1x256xf32, #tpu.memory_space<vmem>>, vector<1x256xf32>
    %12 = vector.broadcast %11 : vector<1x256xf32> to vector<8x256xf32>
    %13 = arith.addf %10, %12 : vector<8x256xf32>
    %cst_11 = arith.constant 0.000000e+00 : f32
    %14 = vector.broadcast %cst_11 : f32 to vector<8x256xf32>
    %15 = arith.maximumf %13, %14 : vector<8x256xf32>
    %16 = arith.truncf %15 : vector<8x256xf32> to vector<8x256xbf16>
    %c0_12 = arith.constant 0 : index
    %c0_13 = arith.constant 0 : index
    %17 = vector.load %arg6[%c0_12, %c0_13] : memref<256x128xbf16, #tpu.memory_space<vmem>>, vector<256x128xbf16>
    %cst_14 = arith.constant dense<0.000000e+00> : vector<8x128xf32>
    %18 = tpu.matmul %16, %17, %cst_14 {dimension_numbers = #tpu.dot_dimension_numbers<[1], [0], [0], [1], [0, 0, 1, 1], [], []>} : vector<8x256xbf16>, vector<256x128xbf16>, vector<8x128xf32> -> vector<8x128xf32>
    %c0_15 = arith.constant 0 : index
    %c0_16 = arith.constant 0 : index
    %19 = vector.load %arg7[%c0_15, %c0_16] : memref<1x128xf32, #tpu.memory_space<vmem>>, vector<1x128xf32>
    %20 = vector.broadcast %19 : vector<1x128xf32> to vector<8x128xf32>
    %21 = arith.addf %18, %20 : vector<8x128xf32>
    %22 = tpu.iota {dimensions = array<i32: 1>} : vector<8x128xi32>
    %23 = math.tanh %21 : vector<8x128xf32>
    %cst_17 = arith.constant 2.000000e+00 : f32
    %24 = vector.broadcast %cst_17 : f32 to vector<8x128xf32>
    %25 = arith.mulf %24, %23 : vector<8x128xf32>
    %cst_18 = arith.constant -2.000000e+01 : f32
    %cst_19 = arith.constant 2.000000e+00 : f32
    %26 = vector.broadcast %cst_18 : f32 to vector<8x128xf32>
    %27 = arith.maximumf %26, %21 : vector<8x128xf32>
    %28 = vector.broadcast %cst_19 : f32 to vector<8x128xf32>
    %29 = arith.minimumf %28, %27 : vector<8x128xf32>
    %30 = math.exp %29 : vector<8x128xf32>
    %c4_i32 = arith.constant 4 : i32
    %31 = vector.broadcast %c4_i32 : i32 to vector<8x128xi32>
    %32 = arith.cmpi slt, %22, %31 : vector<8x128xi32>
    %33 = arith.select %32, %25, %30 : vector<8x128xi1>, vector<8x128xf32>
    %c0_20 = arith.constant 0 : index
    %c0_21 = arith.constant 0 : index
    %34 = vector.load %arg8[%c0_20, %c0_21] : memref<8x128xf32, #tpu.memory_space<vmem>>, vector<8x128xf32>
    tpu.vector_store %arg8[%c0_20, %c0_21], %33 {strides = array<i32>} : memref<8x128xf32, #tpu.memory_space<vmem>>, vector<8x128xf32>,
    return
  }
  func.func @transform_0(%arg0: i32) -> (i32, i32) {
    %c0_i32 = arith.constant 0 : i32
    %c0_i32_0 = arith.constant 0 : i32
    return %arg0, %c0_i32 : i32, i32
  }
  func.func @transform_1(%arg0: i32) -> (i32, i32) {
    %c0_i32 = arith.constant 0 : i32
    %c0_i32_0 = arith.constant 0 : i32
    %c0_i32_1 = arith.constant 0 : i32
    return %c0_i32, %c0_i32_0 : i32, i32
  }
  func.func @transform_2(%arg0: i32) -> (i32, i32) {
    %c0_i32 = arith.constant 0 : i32
    %c0_i32_0 = arith.constant 0 : i32
    %c0_i32_1 = arith.constant 0 : i32
    return %c0_i32, %c0_i32_0 : i32, i32
  }
  func.func @transform_3(%arg0: i32) -> (i32, i32) {
    %c0_i32 = arith.constant 0 : i32
    %c0_i32_0 = arith.constant 0 : i32
    %c0_i32_1 = arith.constant 0 : i32
    return %c0_i32, %c0_i32_0 : i32, i32
  }
  func.func @transform_4(%arg0: i32) -> (i32, i32) {
    %c0_i32 = arith.constant 0 : i32
    %c0_i32_0 = arith.constant 0 : i32
    %c0_i32_1 = arith.constant 0 : i32
    return %c0_i32, %c0_i32_0 : i32, i32
  }
  func.func @transform_5(%arg0: i32) -> (i32, i32) {
    %c0_i32 = arith.constant 0 : i32
    %c0_i32_0 = arith.constant 0 : i32
    %c0_i32_1 = arith.constant 0 : i32
    return %c0_i32, %c0_i32_0 : i32, i32
  }
  func.func @transform_6(%arg0: i32) -> (i32, i32) {
    %c0_i32 = arith.constant 0 : i32
    %c0_i32_0 = arith.constant 0 : i32
    %c0_i32_1 = arith.constant 0 : i32
    return %c0_i32, %c0_i32_0 : i32, i32
  }
  func.func @transform_7(%arg0: i32) -> (i32, i32) {
    %c0_i32 = arith.constant 0 : i32
    %c0_i32_0 = arith.constant 0 : i32
    return %arg0, %c0_i32 : i32, i32
  }
}

</mosaic_0001>

<llo_original>
// kernel: tpu_custom_call.1
$region0: #{tpu_custom_call.1}
  #allocation0 [shape = 'u32[]', space=smem, size = 0x4, offset = 0x4, fixed_abs, tag = 'smem constant byte address 0x4 - core index']
  #allocation1 [shape = 'u32[72,128]{1,0:T(1,128)}', space=vmem, size = 0x9000, scoped, tag = 'internal scratch']
  %s0 = inlined_call_operand.hbm [shape: bf16[8,8], index: 0, kind: input, shape index: {}]
  %s1 = inlined_call_operand.hbm [shape: bf16[8,256], index: 1, kind: input, shape index: {}]
  %s2 = inlined_call_operand.hbm [shape: f32[1,256], index: 2, kind: input, shape index: {}]
  %s3 = inlined_call_operand.hbm [shape: bf16[256,256], index: 3, kind: input, shape index: {}]
  %s4 = inlined_call_operand.vmem [shape: f32[1,256], index: 4, kind: input, shape index: {}]
  %s5 = inlined_call_operand.hbm [shape: bf16[256,128], index: 5, kind: input, shape index: {}]
  %s6 = inlined_call_operand.vmem [shape: f32[1,128], index: 6, kind: input, shape index: {}]
  %s7 = inlined_call_operand.hbm [shape: f32[8,128], index: 7, kind: output, shape index: {}]
  %s8 = sld [smem:[#allocation0]]
  $region58: #{tpu_custom_call.1} parent=0
    _
  %s10 = ssub.s32 1, %s8
  %s11 = scalar_select 0, %s10, %s8
  $region1: #{tpu_custom_call.1} parent=0
    #allocation2 [shape = 'u8[2048]{0}', space=vmem, size = 0x800, scoped, tag = 'input window, operand 0, single buffered']
    #allocation3 [shape = 's32[1]{0}', space=sflag, size = 0x4, scoped, tag = 'scoped memory for tpu_custom_call.1']
    #allocation4 [shape = 's32[1]{0}', space=sflag, size = 0x4, scoped, tag = 'scoped memory for tpu_custom_call.1']
    #allocation5 [shape = 'u8[4096]{0}', space=vmem, size = 0x1000, scoped, tag = 'input window, operand 1, single buffered']
    #allocation6 [shape = 's32[1]{0}', space=sflag, size = 0x4, scoped, tag = 'scoped memory for tpu_custom_call.1']
    #allocation7 [shape = 'u8[1024]{0}', space=vmem, size = 0x400, scoped, tag = 'input window, operand 2, single buffered']
    #allocation8 [shape = 'u8[131072]{0}', space=vmem, size = 0x20000, scoped, tag = 'input window, operand 3, single buffered']
    #allocation9 [shape = 's32[1]{0}', space=sflag, size = 0x4, scoped, tag = 'scoped memory for tpu_custom_call.1']
    #allocation10 [shape = 'u8[65536]{0}', space=vmem, size = 0x10000, scoped, tag = 'input window, operand 5, single buffered']
    #allocation11 [shape = 'u8[4096]{0}', space=vmem, size = 0x1000, scoped, tag = 'output window, operand 0, single buffered']
    %12 = vsyncpa [#allocation3], 0
    %13 = vsyncpa [#allocation6], 0
    %14 = vsyncpa [#allocation9], 0
    %15 = vsyncpa [#allocation4], 0
    // Predicated region
    $region2: #{tpu_custom_call.1} parent=1 // pred_check
      _
    $region3: #{tpu_custom_call.1} parent=1 // pred_check_branch
      %17 = sbr.rel (0) target = $region5
    $region4: #{tpu_custom_call.1} parent=1 // pred_region
      %19 = vsyncadd [#allocation3], 0
      %s21 = sshll.u32 %s0, 4
      %s22 = int_to_ptr.hbm [resolvable:$true] %s21
      %s23 = sshll.u32 [#allocation2], 4
      %s24 = int_to_ptr.vmem [resolvable:$true] %s23
      %26 = dma.hbm_to_vmem [thread:$0]  %s22, 64, %s24, [#allocation3]
    $region5: #{tpu_custom_call.1} parent=1 // pred_fallthru
      _
    // Predicated region
    $region6: #{tpu_custom_call.1} parent=1 // pred_check
      _
    $region7: #{tpu_custom_call.1} parent=1 // pred_check_branch
      %28 = sbr.rel (0) target = $region9
    $region8: #{tpu_custom_call.1} parent=1 // pred_region
      %30 = vsyncadd [#allocation6], 0
      %s32 = sshll.u32 %s1, 4
      %s33 = int_to_ptr.hbm [resolvable:$true] %s32
      %s34 = sshll.u32 [#allocation5], 4
      %s35 = int_to_ptr.vmem [resolvable:$true] %s34
      %37 = dma.hbm_to_vmem [thread:$0]  %s33, 128, %s35, [#allocation6]
    $region9: #{tpu_custom_call.1} parent=1 // pred_fallthru
      _
    // Predicated region
    $region10: #{tpu_custom_call.1} parent=1 // pred_check
      _
    $region11: #{tpu_custom_call.1} parent=1 // pred_check_branch
      %39 = sbr.rel (0) target = $region13
    $region12: #{tpu_custom_call.1} parent=1 // pred_region
      %41 = vsyncadd [#allocation6], 0
      %s43 = sshll.u32 %s2, 4
      %s44 = int_to_ptr.hbm [resolvable:$true] %s43
      %s45 = sshll.u32 [#allocation7], 4
      %s46 = int_to_ptr.vmem [resolvable:$true] %s45
      %48 = dma.hbm_to_vmem [thread:$0]  %s44, 32, %s46, [#allocation6]
    $region13: #{tpu_custom_call.1} parent=1 // pred_fallthru
      _
    // Predicated region
    $region14: #{tpu_custom_call.1} parent=1 // pred_check
      _
    $region15: #{tpu_custom_call.1} parent=1 // pred_check_branch
      %50 = sbr.rel (0) target = $region17
    $region16: #{tpu_custom_call.1} parent=1 // pred_region
      %52 = vsyncadd [#allocation9], 0
      %s53 = sshll.u32 %s3, 4
      %s54 = int_to_ptr.hbm [resolvable:$true] %s53
      %s55 = sshll.u32 [#allocation8], 4
      %s56 = int_to_ptr.vmem [resolvable:$true] %s55
      %61 = dma.hbm_to_vmem [thread:$0]  %s54, 4096, %s56, [#allocation9], 128, 128, 8
    $region17: #{tpu_custom_call.1} parent=1 // pred_fallthru
      _
    // Predicated region
    $region18: #{tpu_custom_call.1} parent=1 // pred_check
      _
    $region19: #{tpu_custom_call.1} parent=1 // pred_check_branch
      %63 = sbr.rel (0) target = $region21
    $region20: #{tpu_custom_call.1} parent=1 // pred_region
      _
    $region21: #{tpu_custom_call.1} parent=1 // pred_fallthru
      _
    // Predicated region
    $region22: #{tpu_custom_call.1} parent=1 // pred_check
      _
    $region23: #{tpu_custom_call.1} parent=1 // pred_check_branch
      %65 = sbr.rel (0) target = $region25
    $region24: #{tpu_custom_call.1} parent=1 // pred_region
      %67 = vsyncadd [#allocation9], 0
      %s68 = sshll.u32 %s5, 4
      %s69 = int_to_ptr.hbm [resolvable:$true] %s68
      %s70 = sshll.u32 [#allocation10], 4
      %s71 = int_to_ptr.vmem [resolvable:$true] %s70
      %76 = dma.hbm_to_vmem [thread:$0]  %s69, 2048, %s71, [#allocation9], 64, 64, 4
    $region25: #{tpu_custom_call.1} parent=1 // pred_fallthru
      _
    // Predicated region
    $region26: #{tpu_custom_call.1} parent=1 // pred_check
      _
    $region27: #{tpu_custom_call.1} parent=1 // pred_check_branch
      %78 = sbr.rel (0) target = $region29
    $region28: #{tpu_custom_call.1} parent=1 // pred_region
      _
    $region29: #{tpu_custom_call.1} parent=1 // pred_fallthru
      _
    // Predicated region
    $region30: #{tpu_custom_call.1} parent=1 // pred_check
      _
    $region31: #{tpu_custom_call.1} parent=1 // pred_check_branch
      %80 = sbr.rel (0) target = $region33
    $region32: #{tpu_custom_call.1} parent=1 // pred_region
      %82 = dma.done [#allocation3], 64
    $region33: #{tpu_custom_call.1} parent=1 // pred_fallthru
      _
    // Predicated region
    $region34: #{tpu_custom_call.1} parent=1 // pred_check
      _
    $region35: #{tpu_custom_call.1} parent=1 // pred_check_branch
      %84 = sbr.rel (0) target = $region37
    $region36: #{tpu_custom_call.1} parent=1 // pred_region
      %86 = dma.done [#allocation6], 128
    $region37: #{tpu_custom_call.1} parent=1 // pred_fallthru
      _
    // Predicated region
    $region38: #{tpu_custom_call.1} parent=1 // pred_check
      _
    $region39: #{tpu_custom_call.1} parent=1 // pred_check_branch
      %88 = sbr.rel (0) target = $region41
    $region40: #{tpu_custom_call.1} parent=1 // pred_region
      %90 = dma.done [#allocation6], 32
    $region41: #{tpu_custom_call.1} parent=1 // pred_fallthru
      _
    // Predicated region
    $region42: #{tpu_custom_call.1} parent=1 // pred_check
      _
    $region43: #{tpu_custom_call.1} parent=1 // pred_check_branch
      %92 = sbr.rel (0) target = $region45
    $region44: #{tpu_custom_call.1} parent=1 // pred_region
      %94 = dma.done [#allocation9], 4096
    $region45: #{tpu_custom_call.1} parent=1 // pred_fallthru
      _
    // Predicated region
    $region46: #{tpu_custom_call.1} parent=1 // pred_check
      _
    $region47: #{tpu_custom_call.1} parent=1 // pred_check_branch
      %96 = sbr.rel (0) target = $region49
    $region48: #{tpu_custom_call.1} parent=1 // pred_region
      %98 = dma.done [#allocation9], 2048
    $region49: #{tpu_custom_call.1} parent=1 // pred_fallthru
      _
    %v100 = vld [vmem:[#allocation2] sm:$0xf]
    %v101 = vld [vmem:[#allocation5] sm:$0xff]
    %v102 = vld [vmem:[#allocation7] sm:$0x3]
    %v104 = vperm.slane %v102, 0
    %v105 = vperm.slane %v102, 1
    %v109 = vunpack.c.l.b16 %v101
    %v110 = vunpack.c.h.b16 %v101
    %v111 = vpack.c.b16 %v109, %v109
    %v112 = vpack.c.b16 %v110, %v110
    %vm113 = vcmask 64512
    %v115 = vsel %vm113, %v100, 0
    %vm117 = vcmask 1043456
    %v119 = vsel %vm117, %v111, 0
    %v122 = vsel %vm117, %v112, 0
    %124 = vmatpush.bf16.msra.mxu0 0
    %125 = vmatpush.bf16.msra.mxu0 0
    %126 = vmatpush.bf16.msra.mxu0 0
    %127 = vmatpush.bf16.msra.mxu0 0
    %128 = vmatpush.bf16.msra.mxu0 0
    %129 = vmatpush.bf16.msra.mxu0 0
    %130 = vmatpush.bf16.msra.mxu0 0
    %131 = vmatpush.bf16.msra.mxu0 %v119
    %132 = vmatmul.bf16.gmra.mxu0 %v115
    %v133 = vpop.f32.mrf.mxu0
    %v134 = vadd.f32 %v104, %v133
    %v135 = vpop.f32.mrf.mxu0
    %136 = vdwg.mxu0
    %137 = vmatpush.bf16.msra.mxu0 0
    %138 = vmatpush.bf16.msra.mxu0 0
    %139 = vmatpush.bf16.msra.mxu0 0
    %140 = vmatpush.bf16.msra.mxu0 0
    %141 = vmatpush.bf16.msra.mxu0 0
    %142 = vmatpush.bf16.msra.mxu0 0
    %143 = vmatpush.bf16.msra.mxu0 0
    %144 = vmatpush.bf16.msra.mxu0 %v122
    %145 = vmatmul.bf16.gmra.mxu0 %v115
    %v146 = vpop.f32.mrf.mxu0
    %v147 = vadd.f32 %v105, %v146
    %v148 = vpop.f32.mrf.mxu0
    %149 = vdwg.mxu0
    %v150 = vmax.f32 %v134, 0.0
    %v151 = vmax.f32 %v147, 0.0
    %v152 = vpack.c.bf16 %v150, %v150
    %v153 = vpack.c.bf16 %v151, %v151
    %v154 = vld [vmem:[#allocation8] sm:$0xff]
    %v155 = vld [vmem:[#allocation8 + $0x8] sm:$0xff]
    %v156 = vld [vmem:[#allocation8 + $0x10] sm:$0xff]
    %v157 = vld [vmem:[#allocation8 + $0x18] sm:$0xff]
    %v158 = vld [vmem:[#allocation8 + $0x20] sm:$0xff]
    %v159 = vld [vmem:[#allocation8 + $0x28] sm:$0xff]
    %v160 = vld [vmem:[#allocation8 + $0x30] sm:$0xff]
    %v161 = vld [vmem:[#allocation8 + $0x38] sm:$0xff]
    %v162 = vld [vmem:[#allocation8 + $0x40] sm:$0xff]
    %v163 = vld [vmem:[#allocation8 + $0x48] sm:$0xff]
    %v164 = vld [vmem:[#allocation8 + $0x50] sm:$0xff]
    %v165 = vld [vmem:[#allocation8 + $0x58] sm:$0xff]
    %v166 = vld [vmem:[#allocation8 + $0x60] sm:$0xff]
    %v167 = vld [vmem:[#allocation8 + $0x68] sm:$0xff]
    %v168 = vld [vmem:[#allocation8 + $0x70] sm:$0xff]
    %v169 = vld [vmem:[#allocation8 + $0x78] sm:$0xff]
    %v170 = vld [vmem:[#allocation8 + $0x80] sm:$0xff]
    %v171 = vld [vmem:[#allocation8 + $0x88] sm:$0xff]
    %v172 = vld [vmem:[#allocation8 + $0x90] sm:$0xff]
    %v173 = vld [vmem:[#allocation8 + $0x98] sm:$0xff]
    %v174 = vld [vmem:[#allocation8 + $0xa0] sm:$0xff]
    %v175 = vld [vmem:[#allocation8 + $0xa8] sm:$0xff]
    %v176 = vld [vmem:[#allocation8 + $0xb0] sm:$0xff]
    %v177 = vld [vmem:[#allocation8 + $0xb8] sm:$0xff]
    %v178 = vld [vmem:[#allocation8 + $0xc0] sm:$0xff]
    %v179 = vld [vmem:[#allocation8 + $0xc8] sm:$0xff]
    %v180 = vld [vmem:[#allocation8 + $0xd0] sm:$0xff]
    %v181 = vld [vmem:[#allocation8 + $0xd8] sm:$0xff]
    %v182 = vld [vmem:[#allocation8 + $0xe0] sm:$0xff]
    %v183 = vld [vmem:[#allocation8 + $0xe8] sm:$0xff]
    %v184 = vld [vmem:[#allocation8 + $0xf0] sm:$0xff]
    %v185 = vld [vmem:[#allocation8 + $0xf8] sm:$0xff]
    %v186 = vld [vmem:[%s4] sm:$0x3]
    %v188 = vperm.slane %v186, 0
    %v189 = vperm.slane %v186, 1
    %v224 = vunpack.c.l.b16 %v154
    %v225 = vunpack.c.h.b16 %v154
    %v226 = vunpack.c.l.b16 %v155
    %v227 = vunpack.c.h.b16 %v155
    %v228 = vunpack.c.l.b16 %v156
    %v229 = vunpack.c.h.b16 %v156
    %v230 = vunpack.c.l.b16 %v157
    %v231 = vunpack.c.h.b16 %v157
    %v232 = vunpack.c.l.b16 %v158
    %v233 = vunpack.c.h.b16 %v158
    %v234 = vunpack.c.l.b16 %v159
    %v235 = vunpack.c.h.b16 %v159
    %v236 = vunpack.c.l.b16 %v160
    %v237 = vunpack.c.h.b16 %v160
    %v238 = vunpack.c.l.b16 %v161
    %v239 = vunpack.c.h.b16 %v161
    %v240 = vunpack.c.l.b16 %v162
    %v241 = vunpack.c.h.b16 %v162
    %v242 = vunpack.c.l.b16 %v163
    %v243 = vunpack.c.h.b16 %v163
    %v244 = vunpack.c.l.b16 %v164
    %v245 = vunpack.c.h.b16 %v164
    %v246 = vunpack.c.l.b16 %v165
    %v247 = vunpack.c.h.b16 %v165
    %v248 = vunpack.c.l.b16 %v166
    %v249 = vunpack.c.h.b16 %v166
    %v250 = vunpack.c.l.b16 %v167
    %v251 = vunpack.c.h.b16 %v167
    %v252 = vunpack.c.l.b16 %v168
    %v253 = vunpack.c.h.b16 %v168
    %v254 = vunpack.c.l.b16 %v169
    %v255 = vunpack.c.h.b16 %v169
    %v256 = vunpack.c.l.b16 %v170
    %v257 = vunpack.c.h.b16 %v170
    %v258 = vunpack.c.l.b16 %v171
    %v259 = vunpack.c.h.b16 %v171
    %v260 = vunpack.c.l.b16 %v172
    %v261 = vunpack.c.h.b16 %v172
    %v262 = vunpack.c.l.b16 %v173
    %v263 = vunpack.c.h.b16 %v173
    %v264 = vunpack.c.l.b16 %v174
    %v265 = vunpack.c.h.b16 %v174
    %v266 = vunpack.c.l.b16 %v175
    %v267 = vunpack.c.h.b16 %v175
    %v268 = vunpack.c.l.b16 %v176
    %v269 = vunpack.c.h.b16 %v176
    %v270 = vunpack.c.l.b16 %v177
    %v271 = vunpack.c.h.b16 %v177
    %v272 = vunpack.c.l.b16 %v178
    %v273 = vunpack.c.h.b16 %v178
    %v274 = vunpack.c.l.b16 %v179
    %v275 = vunpack.c.h.b16 %v179
    %v276 = vunpack.c.l.b16 %v180
    %v277 = vunpack.c.h.b16 %v180
    %v278 = vunpack.c.l.b16 %v181
    %v279 = vunpack.c.h.b16 %v181
    %v280 = vunpack.c.l.b16 %v182
    %v281 = vunpack.c.h.b16 %v182
    %v282 = vunpack.c.l.b16 %v183
    %v283 = vunpack.c.h.b16 %v183
    %v284 = vunpack.c.l.b16 %v184
    %v285 = vunpack.c.h.b16 %v184
    %v286 = vunpack.c.l.b16 %v185
    %v287 = vunpack.c.h.b16 %v185
    %v288 = vpack.c.b16 %v226, %v224
    %v289 = vpack.c.b16 %v227, %v225
    %v290 = vpack.c.b16 %v230, %v228
    %v291 = vpack.c.b16 %v231, %v229
    %v292 = vpack.c.b16 %v234, %v232
    %v293 = vpack.c.b16 %v235, %v233
    %v294 = vpack.c.b16 %v238, %v236
    %v295 = vpack.c.b16 %v239, %v237
    %v296 = vpack.c.b16 %v242, %v240
    %v297 = vpack.c.b16 %v243, %v241
    %v298 = vpack.c.b16 %v246, %v244
    %v299 = vpack.c.b16 %v247, %v245
    %v300 = vpack.c.b16 %v250, %v248
    %v301 = vpack.c.b16 %v251, %v249
    %v302 = vpack.c.b16 %v254, %v252
    %v303 = vpack.c.b16 %v255, %v253
    %v304 = vpack.c.b16 %v258, %v256
    %v305 = vpack.c.b16 %v259, %v257
    %v306 = vpack.c.b16 %v262, %v260
    %v307 = vpack.c.b16 %v263, %v261
    %v308 = vpack.c.b16 %v266, %v264
    %v309 = vpack.c.b16 %v267, %v265
    %v310 = vpack.c.b16 %v270, %v268
    %v311 = vpack.c.b16 %v271, %v269
    %v312 = vpack.c.b16 %v274, %v272
    %v313 = vpack.c.b16 %v275, %v273
    %v314 = vpack.c.b16 %v278, %v276
    %v315 = vpack.c.b16 %v279, %v277
    %v316 = vpack.c.b16 %v282, %v280
    %v317 = vpack.c.b16 %v283, %v281
    %v318 = vpack.c.b16 %v286, %v284
    %v319 = vpack.c.b16 %v287, %v285
    %352 = vmatpush.bf16.msra.mxu0 %v302
    %353 = vmatpush.bf16.msra.mxu0 %v300
    %354 = vmatpush.bf16.msra.mxu0 %v298
    %355 = vmatpush.bf16.msra.mxu0 %v296
    %356 = vmatpush.bf16.msra.mxu0 %v294
    %357 = vmatpush.bf16.msra.mxu0 %v292
    %358 = vmatpush.bf16.msra.mxu0 %v290
    %359 = vmatpush.bf16.msra.mxu0 %v288
    %360 = vmatmul.bf16.gmra.mxu0 %v152
    %v361 = vpop.f32.mrf.mxu0
    %v362 = vadd.f32 %v188, %v361
    %v363 = vpop.f32.mrf.mxu0
    %364 = vdwg.mxu0
    %365 = vmatpush.bf16.msra.mxu0 %v318
    %366 = vmatpush.bf16.msra.mxu0 %v316
    %367 = vmatpush.bf16.msra.mxu0 %v314
    %368 = vmatpush.bf16.msra.mxu0 %v312
    %369 = vmatpush.bf16.msra.mxu0 %v310
    %370 = vmatpush.bf16.msra.mxu0 %v308
    %371 = vmatpush.bf16.msra.mxu0 %v306
    %372 = vmatpush.bf16.msra.mxu0 %v304
    %373 = vmatmul.bf16.gmra.mxu0 %v153
    %v374 = vpop.f32.mrf.mxu0
    %v375 = vadd.f32 %v362, %v374
    %v376 = vpop.f32.mrf.mxu0
    %377 = vdwg.mxu0
    %378 = vmatpush.bf16.msra.mxu0 %v303
    %379 = vmatpush.bf16.msra.mxu0 %v301
    %380 = vmatpush.bf16.msra.mxu0 %v299
    %381 = vmatpush.bf16.msra.mxu0 %v297
    %382 = vmatpush.bf16.msra.mxu0 %v295
    %383 = vmatpush.bf16.msra.mxu0 %v293
    %384 = vmatpush.bf16.msra.mxu0 %v291
    %385 = vmatpush.bf16.msra.mxu0 %v289
    %386 = vmatmul.bf16.gmra.mxu0 %v152
    %v387 = vpop.f32.mrf.mxu0
    %v388 = vadd.f32 %v189, %v387
    %v389 = vpop.f32.mrf.mxu0
    %390 = vdwg.mxu0
    %391 = vmatpush.bf16.msra.mxu0 %v319
    %392 = vmatpush.bf16.msra.mxu0 %v317
    %393 = vmatpush.bf16.msra.mxu0 %v315
    %394 = vmatpush.bf16.msra.mxu0 %v313
    %395 = vmatpush.bf16.msra.mxu0 %v311
    %396 = vmatpush.bf16.msra.mxu0 %v309
    %397 = vmatpush.bf16.msra.mxu0 %v307
    %398 = vmatpush.bf16.msra.mxu0 %v305
    %399 = vmatmul.bf16.gmra.mxu0 %v153
    %v400 = vpop.f32.mrf.mxu0
    %v401 = vadd.f32 %v388, %v400
    %v402 = vpop.f32.mrf.mxu0
    %403 = vdwg.mxu0
    %v404 = vmax.f32 %v375, 0.0
    %v405 = vmax.f32 %v401, 0.0
    %v406 = vpack.c.bf16 %v404, %v404
    %v407 = vpack.c.bf16 %v405, %v405
    %v408 = vld [vmem:[#allocation10] sm:$0xf]
    %v409 = vld [vmem:[#allocation10 + $0x4] sm:$0xf]
    %v410 = vld [vmem:[#allocation10 + $0x8] sm:$0xf]
    %v411 = vld [vmem:[#allocation10 + $0xc] sm:$0xf]
    %v412 = vld [vmem:[#allocation10 + $0x10] sm:$0xf]
    %v413 = vld [vmem:[#allocation10 + $0x14] sm:$0xf]
    %v414 = vld [vmem:[#allocation10 + $0x18] sm:$0xf]
    %v415 = vld [vmem:[#allocation10 + $0x1c] sm:$0xf]
    %v416 = vld [vmem:[#allocation10 + $0x20] sm:$0xf]
    %v417 = vld [vmem:[#allocation10 + $0x24] sm:$0xf]
    %v418 = vld [vmem:[#allocation10 + $0x28] sm:$0xf]
    %v419 = vld [vmem:[#allocation10 + $0x2c] sm:$0xf]
    %v420 = vld [vmem:[#allocation10 + $0x30] sm:$0xf]
    %v421 = vld [vmem:[#allocation10 + $0x34] sm:$0xf]
    %v422 = vld [vmem:[#allocation10 + $0x38] sm:$0xf]
    %v423 = vld [vmem:[#allocation10 + $0x3c] sm:$0xf]
    %v424 = vld [vmem:[#allocation10 + $0x40] sm:$0xf]
    %v425 = vld [vmem:[#allocation10 + $0x44] sm:$0xf]
    %v426 = vld [vmem:[#allocation10 + $0x48] sm:$0xf]
    %v427 = vld [vmem:[#allocation10 + $0x4c] sm:$0xf]
    %v428 = vld [vmem:[#allocation10 + $0x50] sm:$0xf]
    %v429 = vld [vmem:[#allocation10 + $0x54] sm:$0xf]
    %v430 = vld [vmem:[#allocation10 + $0x58] sm:$0xf]
    %v431 = vld [vmem:[#allocation10 + $0x5c] sm:$0xf]
    %v432 = vld [vmem:[#allocation10 + $0x60] sm:$0xf]
    %v433 = vld [vmem:[#allocation10 + $0x64] sm:$0xf]
    %v434 = vld [vmem:[#allocation10 + $0x68] sm:$0xf]
    %v435 = vld [vmem:[#allocation10 + $0x6c] sm:$0xf]
    %v436 = vld [vmem:[#allocation10 + $0x70] sm:$0xf]
    %v437 = vld [vmem:[#allocation10 + $0x74] sm:$0xf]
    %v438 = vld [vmem:[#allocation10 + $0x78] sm:$0xf]
    %v439 = vld [vmem:[#allocation10 + $0x7c] sm:$0xf]
    %v440 = vld [vmem:[%s6] sm:$0x1]
    %v442 = vperm.slane %v440, 0
    %v476 = vunpack.c.l.b16 %v408
    %v477 = vunpack.c.l.b16 %v409
    %v478 = vunpack.c.l.b16 %v410
    %v479 = vunpack.c.l.b16 %v411
    %v480 = vunpack.c.l.b16 %v412
    %v481 = vunpack.c.l.b16 %v413
    %v482 = vunpack.c.l.b16 %v414
    %v483 = vunpack.c.l.b16 %v415
    %v484 = vunpack.c.l.b16 %v416
    %v485 = vunpack.c.l.b16 %v417
    %v486 = vunpack.c.l.b16 %v418
    %v487 = vunpack.c.l.b16 %v419
    %v488 = vunpack.c.l.b16 %v420
    %v489 = vunpack.c.l.b16 %v421
    %v490 = vunpack.c.l.b16 %v422
    %v491 = vunpack.c.l.b16 %v423
    %v492 = vunpack.c.l.b16 %v424
    %v493 = vunpack.c.l.b16 %v425
    %v494 = vunpack.c.l.b16 %v426
    %v495 = vunpack.c.l.b16 %v427
    %v496 = vunpack.c.l.b16 %v428
    %v497 = vunpack.c.l.b16 %v429
    %v498 = vunpack.c.l.b16 %v430
    %v499 = vunpack.c.l.b16 %v431
    %v500 = vunpack.c.l.b16 %v432
    %v501 = vunpack.c.l.b16 %v433
    %v502 = vunpack.c.l.b16 %v434
    %v503 = vunpack.c.l.b16 %v435
    %v504 = vunpack.c.l.b16 %v436
    %v505 = vunpack.c.l.b16 %v437
    %v506 = vunpack.c.l.b16 %v438
    %v507 = vunpack.c.l.b16 %v439
    %v508 = vpack.c.b16 %v477, %v476
    %v509 = vpack.c.b16 %v479, %v478
    %v510 = vpack.c.b16 %v481, %v480
    %v511 = vpack.c.b16 %v483, %v482
    %v512 = vpack.c.b16 %v485, %v484
    %v513 = vpack.c.b16 %v487, %v486
    %v514 = vpack.c.b16 %v489, %v488
    %v515 = vpack.c.b16 %v491, %v490
    %v516 = vpack.c.b16 %v493, %v492
    %v517 = vpack.c.b16 %v495, %v494
    %v518 = vpack.c.b16 %v497, %v496
    %v519 = vpack.c.b16 %v499, %v498
    %v520 = vpack.c.b16 %v501, %v500
    %v521 = vpack.c.b16 %v503, %v502
    %v522 = vpack.c.b16 %v505, %v504
    %v523 = vpack.c.b16 %v507, %v506
    %540 = vmatpush.bf16.msra.mxu0 %v515
    %541 = vmatpush.bf16.msra.mxu0 %v514
    %542 = vmatpush.bf16.msra.mxu0 %v513
    %543 = vmatpush.bf16.msra.mxu0 %v512
    %544 = vmatpush.bf16.msra.mxu0 %v511
    %545 = vmatpush.bf16.msra.mxu0 %v510
    %546 = vmatpush.bf16.msra.mxu0 %v509
    %547 = vmatpush.bf16.msra.mxu0 %v508
    %548 = vmatmul.bf16.gmra.mxu0 %v406
    %v549 = vpop.f32.mrf.mxu0
    %v550 = vadd.f32 %v442, %v549
    %v551 = vpop.f32.mrf.mxu0
    %552 = vdwg.mxu0
    %553 = vmatpush.bf16.msra.mxu0 %v523
    %554 = vmatpush.bf16.msra.mxu0 %v522
    %555 = vmatpush.bf16.msra.mxu0 %v521
    %556 = vmatpush.bf16.msra.mxu0 %v520
    %557 = vmatpush.bf16.msra.mxu0 %v519
    %558 = vmatpush.bf16.msra.mxu0 %v518
    %559 = vmatpush.bf16.msra.mxu0 %v517
    %560 = vmatpush.bf16.msra.mxu0 %v516
    %561 = vmatmul.bf16.gmra.mxu0 %v407
    %v562 = vpop.f32.mrf.mxu0
    %v563 = vadd.f32 %v550, %v562
    %v564 = vpop.f32.mrf.mxu0
    %565 = vdwg.mxu0
    %v566 = vlaneseq
    %v567 = vand.u32 %v566, 127
    %v568 = vtanh.pop %v563
    %v569 = vmul.f32 %v568, 2.0
    %v570 = vmax.f32 %v563, -20.0
    %v571 = vmin.f32 %v570, 2.0
    %v572 = vmul.f32 %v571, 1.442695
    %v573 = vpow.pop %v572
    %vm574 = vcmp.lt.s32.totalorder %v567, 4
    %v575 = vsel %vm574, %v569, %v573
    %576 = vst [vmem:[#allocation11] sm:$0xff] %v575
    // Predicated region
    $region50: #{tpu_custom_call.1} parent=1 // pred_check
      _
    $region51: #{tpu_custom_call.1} parent=1 // pred_check_branch
      %578 = sbr.rel (0) target = $region53
    $region52: #{tpu_custom_call.1} parent=1 // pred_region
      %580 = vsyncadd [#allocation4], 0
      %s582 = sshll.u32 [#allocation11], 4
      %s583 = int_to_ptr.vmem [resolvable:$true] %s582
      %s584 = sshll.u32 %s7, 4
      %s585 = int_to_ptr.hbm [resolvable:$true] %s584
      %587 = dma.vmem_to_hbm [thread:$0]  %s583, 128, %s585, [#allocation4]
    $region53: #{tpu_custom_call.1} parent=1 // pred_fallthru
      _
    // Predicated region
    $region54: #{tpu_custom_call.1} parent=1 // pred_check
      _
    $region55: #{tpu_custom_call.1} parent=1 // pred_check_branch
      %589 = sbr.rel (0) target = $region57
    $region56: #{tpu_custom_call.1} parent=1 // pred_region
      %591 = dma.done [#allocation4], 128
    $region57: #{tpu_custom_call.1} parent=1 // pred_fallthru
      _
    %592 = vsyncpa [#allocation3], 1
    %593 = vsyncpa [#allocation6], 1
    %594 = vsyncpa [#allocation9], 1
    %595 = vsyncpa [#allocation4], 1

</llo_original>
